<compile_context>
chip_gen: v7x
topology: tpu7x:2x2x1
jax: 0.10.0
libtpu: 0.0.40
codegen_flags: <defaults>
</compile_context>

<pallas_src>
import math

import jax
import jax.numpy as jnp
from jax.experimental import pallas as pl
from jax.experimental.pallas import tpu as pltpu

MIN_NORM = 1e-5        # clamp_min used by hyptorch for norms / artanh
PROJ_EPS = 1e-3        # boundary epsilon used by project()
TANH_CLAMP = 15.0      # tanh argument clamp used by hyptorch
ADD_EPS = 1e-5         # denominator epsilon in mobius_add (hyptorch convention)

LANE = 128
SUBLANE = 8


def _round_up(x, m):
    return ((x + m - 1) // m) * m


def _artanh(x):
    x = jnp.clip(x, -1.0 + MIN_NORM, 1.0 - MIN_NORM)
    return 0.5 * (jnp.log1p(x) - jnp.log1p(-x))


def _tanh(x):
    return jnp.tanh(jnp.clip(x, -TANH_CLAMP, TANH_CLAMP))


def _hyp_linear_nobias(x, wt, sqrt_c):
    """project(mobius_matvec(W, x, c), c), wt = W^T (zero-padded).

    Returns (res, ||res||^2).  The post-projection norm is derived analytically
    (||res_c|| = tanh(...)/sqrt_c), avoiding an extra cross-lane reduction and
    letting mobius_add reuse it.
    """
    xf = x.astype(jnp.float32)
    x_norm = jnp.maximum(
        jnp.sqrt(jnp.sum(xf * xf, axis=-1, keepdims=True)), MIN_NORM)

    # MXU matmul in the native input dtype; f32 accumulation.
    mx = jnp.dot(x, wt, preferred_element_type=jnp.float32)
    mx_norm = jnp.maximum(
        jnp.sqrt(jnp.sum(mx * mx, axis=-1, keepdims=True)), MIN_NORM)

    t = _tanh(mx_norm / x_norm * _artanh(sqrt_c * x_norm))        # (bt, 1)
    r_norm = t / sqrt_c                                           # = ||res_c||

    # project(): scale = min(1, maxnorm / max(||res||, MIN_NORM))
    maxnorm = (1.0 - PROJ_EPS) / sqrt_c
    proj = jnp.minimum(1.0, maxnorm / jnp.maximum(r_norm, MIN_NORM))

    # res = mx * (tanh(...)/(mx_norm*sqrt_c)) * proj  — single broadcast mult.
    # (When mx == 0 everywhere, res is exactly 0, so no explicit zero-branch.)
    scale = (r_norm / mx_norm) * proj                              # (bt, 1)
    res = mx * scale

    out_norm = jnp.minimum(r_norm, maxnorm)
    return res, out_norm * out_norm


def _mobius_add(x, y, x_sq, y_sq, c):
    xy = jnp.sum(x * y, axis=-1, keepdims=True)
    coef_x = 1.0 + 2.0 * c * xy + c * y_sq
    coef_y = 1.0 - c * x_sq
    num = coef_x * x + coef_y * y
    denom = 1.0 + 2.0 * c * xy + (c * c) * x_sq * y_sq
    inv = 1.0 / (denom + ADD_EPS)          # (bt, 1) divide, broadcast multiply
    return num * inv


def _make_kernel(curvature: float):
    c = float(curvature)
    sqrt_c = math.sqrt(c)

    def kernel(x1_ref, x2_ref, w1t_ref, w2t_ref, o_ref):
        l1, l1_sq = _hyp_linear_nobias(x1_ref[...], w1t_ref[...], sqrt_c)
        l2, l2_sq = _hyp_linear_nobias(x2_ref[...], w2t_ref[...], sqrt_c)
        out = _mobius_add(l1, l2, l1_sq, l2_sq, c)
        o_ref[...] = out.astype(o_ref.dtype)

    return kernel


def _vmem_estimate(bt, d1p, d2p, dop):
    """Rough working-set estimate (bytes) for one grid step."""
    bytes_in = 2 * bt * (d1p + d2p) * 4           # double-buffered input tiles
    bytes_w = (d1p + d2p) * dop * 4               # weights resident once
    bytes_out = 2 * bt * dop * 4                  # double-buffered output tile
    bytes_tmp = bt * (d1p + d2p + 6 * dop) * 4    # f32 intermediates
    return bytes_in + bytes_w + bytes_out + bytes_tmp


def concat_poincare_forward(x1, x2, w1, w2, curvature, *,
                            batch_tile=256,
                            vmem_budget_bytes=40 * 1024 * 1024):
    """x1: (B, d1), x2: (B, d2), w1: (d_out, d1), w2: (d_out, d2) -> (B, d_out)."""
    B, d1 = x1.shape
    B2, d2 = x2.shape
    assert B == B2
    d_out = w1.shape[0]
    assert w1.shape == (d_out, d1) and w2.shape == (d_out, d2)

    # Lane-dense padding (exact: zero rows/cols do not change the math).
    d1p = _round_up(d1, LANE)
    d2p = _round_up(d2, LANE)
    dop = _round_up(d_out, LANE)
    B8 = _round_up(B, SUBLANE)

    # Pick the batch tile: large (default 256), but
    #   * at least 2 grid steps when possible (v7x has 2 TensorCores),
    #   * within the VMEM budget (sized for v7x's 64 MiB per-TC VMEM).
    bt = max(SUBLANE, min(batch_tile, B8))
    if B8 // bt < 2 and B8 >= 2 * SUBLANE:
        bt = min(bt, _round_up(B8 // 2, SUBLANE))
    while bt > SUBLANE and _vmem_estimate(bt, d1p, d2p, dop) > vmem_budget_bytes:
        bt = max(SUBLANE, _round_up(bt // 2, SUBLANE))
    Bp = _round_up(B8, bt)

    # Zero-padded operands; weights pre-transposed to (in, out) so the kernel
    # computes x @ W^T directly on the MXU.
    x1p = jnp.zeros((Bp, d1p), x1.dtype).at[:B, :d1].set(x1)
    x2p = jnp.zeros((Bp, d2p), x2.dtype).at[:B, :d2].set(x2)
    w1t = jnp.zeros((d1p, dop), w1.dtype).at[:d1, :d_out].set(jnp.transpose(w1))
    w2t = jnp.zeros((d2p, dop), w2.dtype).at[:d2, :d_out].set(jnp.transpose(w2))

    kernel = _make_kernel(curvature)
    grid = (Bp // bt,)

    vmem_limit = int(min(max(2 * _vmem_estimate(bt, d1p, d2p, dop),
                             32 * 1024 * 1024),
                         48 * 1024 * 1024))

    out_p = pl.pallas_call(
        kernel,
        out_shape=jax.ShapeDtypeStruct((Bp, dop), x1.dtype),
        grid_spec=pltpu.PrefetchScalarGridSpec(
            num_scalar_prefetch=0,
            grid=grid,
            in_specs=[
                pl.BlockSpec((bt, d1p), lambda i: (i, 0)),
                pl.BlockSpec((bt, d2p), lambda i: (i, 0)),
                # Grid-invariant weights: whole array resident in VMEM once,
                # no per-step double-buffered DMA.
                pl.BlockSpec(memory_space=pltpu.MemorySpace.VMEM),
                pl.BlockSpec(memory_space=pltpu.MemorySpace.VMEM),
            ],
            out_specs=pl.BlockSpec((bt, dop), lambda i: (i, 0)),
        ),
        compiler_params=pltpu.CompilerParams(
            dimension_semantics=("parallel",),
            vmem_limit_bytes=vmem_limit,
        ),
    )(x1p, x2p, w1t, w2t)

    return out_p[:B, :d_out]


# ---------------------------------------------------------------------------
# Reference (pure JAX, mirrors hyptorch pmath exactly) and demo.
# ---------------------------------------------------------------------------

def _reference_forward(x1, x2, w1, w2, c):
    sqrt_c = math.sqrt(c)

    def hyp_linear(x, w):
        x_norm = jnp.maximum(jnp.linalg.norm(x, axis=-1, keepdims=True), MIN_NORM)
        mx = x @ w.T
        mx_norm = jnp.maximum(jnp.linalg.norm(mx, axis=-1, keepdims=True), MIN_NORM)
        res_c = _tanh(mx_norm / x_norm * _artanh(sqrt_c * x_norm)) * mx / (mx_norm * sqrt_c)
        cond = jnp.all(mx == 0.0, axis=-1, keepdims=True)
        res = jnp.where(cond, jnp.zeros_like(res_c), res_c)
        r_norm = jnp.maximum(jnp.linalg.norm(res, axis=-1, keepdims=True), MIN_NORM)
        maxnorm = (1.0 - PROJ_EPS) / sqrt_c
        return jnp.where(r_norm > maxnorm, res / r_norm * maxnorm, res)

    def mob_add(x, y):
        x_sq = jnp.sum(x * x, -1, keepdims=True)
        y_sq = jnp.sum(y * y, -1, keepdims=True)
        xy = jnp.sum(x * y, -1, keepdims=True)
        num = (1 + 2 * c * xy + c * y_sq) * x + (1 - c * x_sq) * y
        denom = 1 + 2 * c * xy + c * c * x_sq * y_sq
        return num / (denom + ADD_EPS)

    return mob_add(hyp_linear(x1, w1), hyp_linear(x2, w2))


def _kaiming_uniform(key, out_features, in_features):
    # torch.nn.init.kaiming_uniform_(w, a=sqrt(5)) -> bound = 1/sqrt(fan_in)
    bound = 1.0 / math.sqrt(in_features)
    return jax.random.uniform(
        key, (out_features, in_features), minval=-bound, maxval=bound,
        dtype=jnp.float32)


if __name__ == "__main__":
    # Small, module-consistent shapes.
    B, d1, d2, d_out = 32, 32, 48, 64
    curvature = 1.0

    key = jax.random.PRNGKey(0)
    k_x1, k_x2, k_w1, k_w2 = jax.random.split(key, 4)

    # Inputs: points well inside the Poincaré ball.
    x1 = 0.05 * jax.random.normal(k_x1, (B, d1), dtype=jnp.float32)
    x2 = 0.05 * jax.random.normal(k_x2, (B, d2), dtype=jnp.float32)

    # Deterministic parameter init matching HypLinear.reset_parameters (bias=False).
    w1 = _kaiming_uniform(k_w1, d_out, d1)
    w2 = _kaiming_uniform(k_w2, d_out, d2)

    out = concat_poincare_forward(x1, x2, w1, w2, curvature)
    out = jax.block_until_ready(out)

    assert out.shape == (B, d_out) and out.dtype == jnp.float32
    assert bool(jnp.all(jnp.isfinite(out)))

    ref = _reference_forward(x1, x2, w1, w2, curvature)
    assert bool(jnp.allclose(out, ref, rtol=1e-2, atol=1e-3)), "mismatch vs reference"

    print("KERNEL_OK")
</pallas_src>

<mosaic_0001>
module attributes {stable_mosaic.version = 11 : i64} {
  func.func @kernel(%arg0: i32, %arg1: memref<16x128xf32, #tpu.memory_space<vmem>>, %arg2: memref<16x128xf32, #tpu.memory_space<vmem>>, %arg3: memref<128x128xf32, #tpu.memory_space<vmem>>, %arg4: memref<128x128xf32, #tpu.memory_space<vmem>>, %arg5: memref<16x128xf32, #tpu.memory_space<vmem>>) attributes {dimension_semantics = [#tpu.dimension_semantics<parallel>], iteration_bounds = array<i64: 2>, scalar_prefetch = 0 : i64, scratch_operands = 0 : i64, tpu.core_type = #tpu.core_type<tc>, window_params = [{transform_indices = @transform_0, window_bounds = array<i64: 16, 128>}, {transform_indices = @transform_1, window_bounds = array<i64: 16, 128>}, {pipeline_mode = #tpu.pipeline_mode<synchronous>, transform_indices = @transform_2, window_bounds = array<i64: 128, 128>}, {pipeline_mode = #tpu.pipeline_mode<synchronous>, transform_indices = @transform_3, window_bounds = array<i64: 128, 128>}, {transform_indices = @transform_4, window_bounds = array<i64: 16, 128>}]} {
    %c0 = arith.constant 0 : index
    %c0_0 = arith.constant 0 : index
    %0 = vector.load %arg1[%c0, %c0_0] : memref<16x128xf32, #tpu.memory_space<vmem>>, vector<16x128xf32>
    %c0_1 = arith.constant 0 : index
    %c0_2 = arith.constant 0 : index
    %1 = vector.load %arg3[%c0_1, %c0_2] : memref<128x128xf32, #tpu.memory_space<vmem>>, vector<128x128xf32>
    %2 = arith.mulf %0, %0 : vector<16x128xf32>
    %cst = arith.constant dense<0.000000e+00> : vector<16xf32>
    %3 = vector.multi_reduction <add>, %2, %cst [1] : vector<16x128xf32> to vector<16xf32>
    %4 = vector.shape_cast %3 : vector<16xf32> to vector<16x1xf32>
    %5 = math.sqrt %4 : vector<16x1xf32>
    %cst_3 = arith.constant 9.99999974E-6 : f32
    %6 = vector.broadcast %cst_3 : f32 to vector<16x1xf32>
    %7 = arith.maximumf %5, %6 : vector<16x1xf32>
    %cst_4 = arith.constant dense<0.000000e+00> : vector<16x128xf32>
    %8 = tpu.matmul %0, %1, %cst_4 {dimension_numbers = #tpu.dot_dimension_numbers<[1], [0], [0], [1], [0, 0, 1, 1], [], []>} : vector<16x128xf32>, vector<128x128xf32>, vector<16x128xf32> -> vector<16x128xf32>
    %9 = arith.mulf %8, %8 : vector<16x128xf32>
    %cst_5 = arith.constant dense<0.000000e+00> : vector<16xf32>
    %10 = vector.multi_reduction <add>, %9, %cst_5 [1] : vector<16x128xf32> to vector<16xf32>
    %11 = vector.shape_cast %10 : vector<16xf32> to vector<16x1xf32>
    %12 = math.sqrt %11 : vector<16x1xf32>
    %cst_6 = arith.constant 9.99999974E-6 : f32
    %13 = vector.broadcast %cst_6 : f32 to vector<16x1xf32>
    %14 = arith.maximumf %12, %13 : vector<16x1xf32>
    %15 = arith.divf %14, %7 : vector<16x1xf32>
    %cst_7 = arith.constant 1.000000e+00 : f32
    %16 = vector.broadcast %cst_7 : f32 to vector<16x1xf32>
    %17 = arith.mulf %16, %7 : vector<16x1xf32>
    %cst_8 = arith.constant -0.999989986 : f32
    %cst_9 = arith.constant 0.999989986 : f32
    %18 = vector.broadcast %cst_8 : f32 to vector<16x1xf32>
    %19 = arith.maximumf %18, %17 : vector<16x1xf32>
    %20 = vector.broadcast %cst_9 : f32 to vector<16x1xf32>
    %21 = arith.minimumf %20, %19 : vector<16x1xf32>
    %22 = math.log1p %21 : vector<16x1xf32>
    %cst_10 = arith.constant 0.000000e+00 : f32
    %23 = vector.broadcast %cst_10 : f32 to vector<16x1xf32>
    %24 = arith.subf %23, %21 : vector<16x1xf32>
    %25 = math.log1p %24 : vector<16x1xf32>
    %26 = arith.subf %22, %25 : vector<16x1xf32>
    %cst_11 = arith.constant 5.000000e-01 : f32
    %27 = vector.broadcast %cst_11 : f32 to vector<16x1xf32>
    %28 = arith.mulf %27, %26 : vector<16x1xf32>
    %29 = arith.mulf %15, %28 : vector<16x1xf32>
    %cst_12 = arith.constant -1.500000e+01 : f32
    %cst_13 = arith.constant 1.500000e+01 : f32
    %30 = vector.broadcast %cst_12 : f32 to vector<16x1xf32>
    %31 = arith.maximumf %30, %29 : vector<16x1xf32>
    %32 = vector.broadcast %cst_13 : f32 to vector<16x1xf32>
    %33 = arith.minimumf %32, %31 : vector<16x1xf32>
    %34 = math.tanh %33 : vector<16x1xf32>
    %cst_14 = arith.constant 1.000000e+00 : f32
    %35 = vector.broadcast %cst_14 : f32 to vector<16x1xf32>
    %36 = arith.divf %34, %35 : vector<16x1xf32>
    %cst_15 = arith.constant 9.99999974E-6 : f32
    %37 = vector.broadcast %cst_15 : f32 to vector<16x1xf32>
    %38 = arith.maximumf %36, %37 : vector<16x1xf32>
    %cst_16 = arith.constant 9.990000e-01 : f32
    %39 = vector.broadcast %cst_16 : f32 to vector<16x1xf32>
    %40 = arith.divf %39, %38 : vector<16x1xf32>
    %cst_17 = arith.constant 1.000000e+00 : f32
    %41 = vector.broadcast %cst_17 : f32 to vector<16x1xf32>
    %42 = arith.minimumf %41, %40 : vector<16x1xf32>
    %43 = arith.divf %36, %14 : vector<16x1xf32>
    %44 = arith.mulf %43, %42 : vector<16x1xf32>
    %45 = vector.broadcast %44 : vector<16x1xf32> to vector<16x128xf32>
    %46 = arith.mulf %8, %45 : vector<16x128xf32>
    %cst_18 = arith.constant 9.990000e-01 : f32
    %47 = vector.broadcast %cst_18 : f32 to vector<16x1xf32>
    %48 = arith.minimumf %36, %47 : vector<16x1xf32>
    %49 = arith.mulf %48, %48 : vector<16x1xf32>
    %c0_19 = arith.constant 0 : index
    %c0_20 = arith.constant 0 : index
    %50 = vector.load %arg2[%c0_19, %c0_20] : memref<16x128xf32, #tpu.memory_space<vmem>>, vector<16x128xf32>
    %c0_21 = arith.constant 0 : index
    %c0_22 = arith.constant 0 : index
    %51 = vector.load %arg4[%c0_21, %c0_22] : memref<128x128xf32, #tpu.memory_space<vmem>>, vector<128x128xf32>
    %52 = arith.mulf %50, %50 : vector<16x128xf32>
    %cst_23 = arith.constant dense<0.000000e+00> : vector<16xf32>
    %53 = vector.multi_reduction <add>, %52, %cst_23 [1] : vector<16x128xf32> to vector<16xf32>
    %54 = vector.shape_cast %53 : vector<16xf32> to vector<16x1xf32>
    %55 = math.sqrt %54 : vector<16x1xf32>
    %cst_24 = arith.constant 9.99999974E-6 : f32
    %56 = vector.broadcast %cst_24 : f32 to vector<16x1xf32>
    %57 = arith.maximumf %55, %56 : vector<16x1xf32>
    %cst_25 = arith.constant dense<0.000000e+00> : vector<16x128xf32>
    %58 = tpu.matmul %50, %51, %cst_25 {dimension_numbers = #tpu.dot_dimension_numbers<[1], [0], [0], [1], [0, 0, 1, 1], [], []>} : vector<16x128xf32>, vector<128x128xf32>, vector<16x128xf32> -> vector<16x128xf32>
    %59 = arith.mulf %58, %58 : vector<16x128xf32>
    %cst_26 = arith.constant dense<0.000000e+00> : vector<16xf32>
    %60 = vector.multi_reduction <add>, %59, %cst_26 [1] : vector<16x128xf32> to vector<16xf32>
    %61 = vector.shape_cast %60 : vector<16xf32> to vector<16x1xf32>
    %62 = math.sqrt %61 : vector<16x1xf32>
    %cst_27 = arith.constant 9.99999974E-6 : f32
    %63 = vector.broadcast %cst_27 : f32 to vector<16x1xf32>
    %64 = arith.maximumf %62, %63 : vector<16x1xf32>
    %65 = arith.divf %64, %57 : vector<16x1xf32>
    %cst_28 = arith.constant 1.000000e+00 : f32
    %66 = vector.broadcast %cst_28 : f32 to vector<16x1xf32>
    %67 = arith.mulf %66, %57 : vector<16x1xf32>
    %cst_29 = arith.constant -0.999989986 : f32
    %cst_30 = arith.constant 0.999989986 : f32
    %68 = vector.broadcast %cst_29 : f32 to vector<16x1xf32>
    %69 = arith.maximumf %68, %67 : vector<16x1xf32>
    %70 = vector.broadcast %cst_30 : f32 to vector<16x1xf32>
    %71 = arith.minimumf %70, %69 : vector<16x1xf32>
    %72 = math.log1p %71 : vector<16x1xf32>
    %cst_31 = arith.constant 0.000000e+00 : f32
    %73 = vector.broadcast %cst_31 : f32 to vector<16x1xf32>
    %74 = arith.subf %73, %71 : vector<16x1xf32>
    %75 = math.log1p %74 : vector<16x1xf32>
    %76 = arith.subf %72, %75 : vector<16x1xf32>
    %cst_32 = arith.constant 5.000000e-01 : f32
    %77 = vector.broadcast %cst_32 : f32 to vector<16x1xf32>
    %78 = arith.mulf %77, %76 : vector<16x1xf32>
    %79 = arith.mulf %65, %78 : vector<16x1xf32>
    %cst_33 = arith.constant -1.500000e+01 : f32
    %cst_34 = arith.constant 1.500000e+01 : f32
    %80 = vector.broadcast %cst_33 : f32 to vector<16x1xf32>
    %81 = arith.maximumf %80, %79 : vector<16x1xf32>
    %82 = vector.broadcast %cst_34 : f32 to vector<16x1xf32>
    %83 = arith.minimumf %82, %81 : vector<16x1xf32>
    %84 = math.tanh %83 : vector<16x1xf32>
    %cst_35 = arith.constant 1.000000e+00 : f32
    %85 = vector.broadcast %cst_35 : f32 to vector<16x1xf32>
    %86 = arith.divf %84, %85 : vector<16x1xf32>
    %cst_36 = arith.constant 9.99999974E-6 : f32
    %87 = vector.broadcast %cst_36 : f32 to vector<16x1xf32>
    %88 = arith.maximumf %86, %87 : vector<16x1xf32>
    %cst_37 = arith.constant 9.990000e-01 : f32
    %89 = vector.broadcast %cst_37 : f32 to vector<16x1xf32>
    %90 = arith.divf %89, %88 : vector<16x1xf32>
    %cst_38 = arith.constant 1.000000e+00 : f32
    %91 = vector.broadcast %cst_38 : f32 to vector<16x1xf32>
    %92 = arith.minimumf %91, %90 : vector<16x1xf32>
    %93 = arith.divf %86, %64 : vector<16x1xf32>
    %94 = arith.mulf %93, %92 : vector<16x1xf32>
    %95 = vector.broadcast %94 : vector<16x1xf32> to vector<16x128xf32>
    %96 = arith.mulf %58, %95 : vector<16x128xf32>
    %cst_39 = arith.constant 9.990000e-01 : f32
    %97 = vector.broadcast %cst_39 : f32 to vector<16x1xf32>
    %98 = arith.minimumf %86, %97 : vector<16x1xf32>
    %99 = arith.mulf %98, %98 : vector<16x1xf32>
    %100 = arith.mulf %46, %96 : vector<16x128xf32>
    %cst_40 = arith.constant dense<0.000000e+00> : vector<16xf32>
    %101 = vector.multi_reduction <add>, %100, %cst_40 [1] : vector<16x128xf32> to vector<16xf32>
    %102 = vector.shape_cast %101 : vector<16xf32> to vector<16x1xf32>
    %cst_41 = arith.constant 2.000000e+00 : f32
    %103 = vector.broadcast %cst_41 : f32 to vector<16x1xf32>
    %104 = arith.mulf %103, %102 : vector<16x1xf32>
    %cst_42 = arith.constant 1.000000e+00 : f32
    %105 = vector.broadcast %cst_42 : f32 to vector<16x1xf32>
    %106 = arith.addf %105, %104 : vector<16x1xf32>
    %cst_43 = arith.constant 1.000000e+00 : f32
    %107 = vector.broadcast %cst_43 : f32 to vector<16x1xf32>
    %108 = arith.mulf %107, %99 : vector<16x1xf32>
    %109 = arith.addf %106, %108 : vector<16x1xf32>
    %cst_44 = arith.constant 1.000000e+00 : f32
    %110 = vector.broadcast %cst_44 : f32 to vector<16x1xf32>
    %111 = arith.mulf %110, %49 : vector<16x1xf32>
    %cst_45 = arith.constant 1.000000e+00 : f32
    %112 = vector.broadcast %cst_45 : f32 to vector<16x1xf32>
    %113 = arith.subf %112, %111 : vector<16x1xf32>
    %114 = vector.broadcast %109 : vector<16x1xf32> to vector<16x128xf32>
    %115 = arith.mulf %114, %46 : vector<16x128xf32>
    %116 = vector.broadcast %113 : vector<16x1xf32> to vector<16x128xf32>
    %117 = arith.mulf %116, %96 : vector<16x128xf32>
    %118 = arith.addf %115, %117 : vector<16x128xf32>
    %cst_46 = arith.constant 2.000000e+00 : f32
    %119 = vector.broadcast %cst_46 : f32 to vector<16x1xf32>
    %120 = arith.mulf %119, %102 : vector<16x1xf32>
    %cst_47 = arith.constant 1.000000e+00 : f32
    %121 = vector.broadcast %cst_47 : f32 to vector<16x1xf32>
    %122 = arith.addf %121, %120 : vector<16x1xf32>
    %cst_48 = arith.constant 1.000000e+00 : f32
    %123 = vector.broadcast %cst_48 : f32 to vector<16x1xf32>
    %124 = arith.mulf %123, %49 : vector<16x1xf32>
    %125 = arith.mulf %124, %99 : vector<16x1xf32>
    %126 = arith.addf %122, %125 : vector<16x1xf32>
    %cst_49 = arith.constant 9.99999974E-6 : f32
    %127 = vector.broadcast %cst_49 : f32 to vector<16x1xf32>
    %128 = arith.addf %126, %127 : vector<16x1xf32>
    %cst_50 = arith.constant 1.000000e+00 : f32
    %129 = vector.broadcast %cst_50 : f32 to vector<16x1xf32>
    %130 = arith.divf %129, %128 : vector<16x1xf32>
    %131 = vector.broadcast %130 : vector<16x1xf32> to vector<16x128xf32>
    %132 = arith.mulf %118, %131 : vector<16x128xf32>
    %c0_51 = arith.constant 0 : index
    %c0_52 = arith.constant 0 : index
    %133 = vector.load %arg5[%c0_51, %c0_52] : memref<16x128xf32, #tpu.memory_space<vmem>>, vector<16x128xf32>
    tpu.vector_store %arg5[%c0_51, %c0_52], %132 {strides = array<i32>} : memref<16x128xf32, #tpu.memory_space<vmem>>, vector<16x128xf32>,
    return
  }
  func.func @transform_0(%arg0: i32) -> (i32, i32) {
    %c0_i32 = arith.constant 0 : i32
    %c0_i32_0 = arith.constant 0 : i32
    return %arg0, %c0_i32 : i32, i32
  }
  func.func @transform_1(%arg0: i32) -> (i32, i32) {
    %c0_i32 = arith.constant 0 : i32
    %c0_i32_0 = arith.constant 0 : i32
    return %arg0, %c0_i32 : i32, i32
  }
  func.func @transform_2(%arg0: i32) -> (i32, i32) {
    %c0_i32 = arith.constant 0 : i32
    %c0_i32_0 = arith.constant 0 : i32
    %c0_i32_1 = arith.constant 0 : i32
    return %c0_i32, %c0_i32_0 : i32, i32
  }
  func.func @transform_3(%arg0: i32) -> (i32, i32) {
    %c0_i32 = arith.constant 0 : i32
    %c0_i32_0 = arith.constant 0 : i32
    %c0_i32_1 = arith.constant 0 : i32
    return %c0_i32, %c0_i32_0 : i32, i32
  }
  func.func @transform_4(%arg0: i32) -> (i32, i32) {
    %c0_i32 = arith.constant 0 : i32
    %c0_i32_0 = arith.constant 0 : i32
    return %arg0, %c0_i32 : i32, i32
  }
}

</mosaic_0001>

<llo_original>
// kernel: tpu_custom_call.1
$region0: #{tpu_custom_call.1}
  #allocation0 [shape = 'u32[]', space=smem, size = 0x4, offset = 0x4, fixed_abs, tag = 'smem constant byte address 0x4 - core index']
  #allocation1 [shape = 'u32[144,128]{1,0:T(1,128)}', space=vmem, size = 0x12000, scoped, tag = 'internal scratch']
  %s0 = inlined_call_operand.hbm [shape: f32[32,128], index: 0, kind: input, shape index: {}]
  %s1 = inlined_call_operand.hbm [shape: f32[32,128], index: 1, kind: input, shape index: {}]
  %s2 = inlined_call_operand.hbm [shape: f32[128,128], index: 2, kind: input, shape index: {}]
  %s3 = inlined_call_operand.hbm [shape: f32[128,128], index: 3, kind: input, shape index: {}]
  %s4 = inlined_call_operand.hbm [shape: f32[32,128], index: 4, kind: output, shape index: {}]
  %s5 = sld [smem:[#allocation0]]
  $region65: #{tpu_custom_call.1} parent=0
    _
  %s7 = ssub.s32 1, %s5
  %s8 = scalar_select 0, %s7, %s5
  $region1: #{tpu_custom_call.1} parent=0
    #allocation2 [shape = 'u8[16384]{0}', space=vmem, size = 0x4000, scoped, tag = 'input window, operand 0']
    #allocation3 [shape = 's32[2]{0}', space=sflag, size = 0x8, scoped, tag = 'scoped memory for tpu_custom_call.1']
    #allocation4 [shape = 's32[2]{0}', space=sflag, size = 0x8, scoped, tag = 'scoped memory for tpu_custom_call.1']
    #allocation5 [shape = 'u8[16384]{0}', space=vmem, size = 0x4000, scoped, tag = 'input window, operand 1']
    #allocation6 [shape = 's32[2]{0}', space=sflag, size = 0x8, scoped, tag = 'scoped memory for tpu_custom_call.1']
    #allocation7 [shape = 'u8[65536]{0}', space=vmem, size = 0x10000, scoped, tag = 'input window, operand 2, single buffered']
    #allocation8 [shape = 'u8[65536]{0}', space=vmem, size = 0x10000, scoped, tag = 'input window, operand 3, single buffered']
    #allocation9 [shape = 's32[1]{0}', space=sflag, size = 0x4, scoped, tag = 'scoped memory for tpu_custom_call.1']
    #allocation10 [shape = 'u8[16384]{0}', space=vmem, size = 0x4000, scoped, tag = 'output window, operand 0']
    %9 = vsyncpa [#allocation3], 0
    %s10 = scalar_lea.sflag [#allocation3], 1
    %11 = vsyncpa %s10, 0
    %12 = vsyncpa [#allocation6], 0
    %s13 = scalar_lea.sflag [#allocation6], 1
    %14 = vsyncpa %s13, 0
    %15 = vsyncpa [#allocation9], 0
    %16 = vsyncpa [#allocation4], 0
    %s17 = scalar_lea.sflag [#allocation4], 1
    %18 = vsyncpa %s17, 0
    loop: start=0, step=1, limit=4
    $region2: #{tpu_custom_call.1} parent=1 // loop_pre_header
      _
    $region3: #{tpu_custom_call.1} parent=1 // loop_header
      %s20 = sphi 0, %s24
      %p21 = scmp.ge.s32.totalorder %s20, 4
      %s30 = sphi 0, %s32
      %s33 = sphi 0, %s30
      %s34 = sphi 0, %s33
      %s50 = sphi 0, %s34
      %s56 = sphi 0, %s58
      %s59 = sphi 0, %s56
      %s60 = sphi 0, %s59
      %s76 = sphi 0, %s60
      %s80 = sphi 0, %s80
      %s82 = sphi 0, %s80
      %s83 = sphi 0, %s82
      %s97 = sphi 0, %s83
      %s101 = sphi 0, %s101
      %s103 = sphi 0, %s101
      %s104 = sphi 0, %s103
      %s118 = sphi 0, %s104
      %s124 = sphi 0, %s126
      %s127 = sphi 0, %s124
      %s128 = sphi 0, %s127
      %s144 = sphi 0, %s128
    $region4: #{tpu_custom_call.1} parent=1 // loop_header_branch
      %23 = sbr.rel (%p21) target = $region8
    $region5: #{tpu_custom_call.1} parent=1 // loop_body
      %s25 = ssub.s32 %s20, 1
      %s26 = ssub.s32 %s20, 2
      %s27 = sadd.s32 %s20, 1
      %s28 = ssub.s32 %s20, %s27
      %p29 = scmp.eq.s32.totalorder %s28, 0
      %s31 = sadd.s32 %s30, 1
      %s32 = scalar_select %p29, %s30, %s31
      %p35 = pneg %p29
      %p36 = scmp.eq.s32.totalorder %s20, 1
      %p37 = por %p35, %p36
      %p38 = scmp.ne.s32.totalorder %s30, %s33
      %p39 = scmp.eq.s32.totalorder %s20, 0
      %p40 = por %p38, %p39
      %p41 = scmp.ne.s32.totalorder %s30, %s33
      %p42 = scmp.eq.s32.totalorder %s25, 1
      %p43 = por %p41, %p42
      %p44 = scmp.ne.s32.totalorder %s33, %s34
      %p45 = scmp.eq.s32.totalorder %s25, 0
      %p46 = por %p44, %p45
      %p47 = scmp.ne.s32.totalorder %s33, %s34
      %p48 = scmp.eq.s32.totalorder %s26, 1
      %p49 = por %p47, %p48
      %p51 = scmp.ne.s32.totalorder %s34, %s50
      %p52 = scmp.eq.s32.totalorder %s26, 0
      %p53 = por %p51, %p52
      %s54 = ssub.s32 %s20, %s27
      %p55 = scmp.eq.s32.totalorder %s54, 0
      %s57 = sadd.s32 %s56, 1
      %s58 = scalar_select %p55, %s56, %s57
      %p61 = pneg %p55
      %p62 = scmp.eq.s32.totalorder %s20, 1
      %p63 = por %p61, %p62
      %p64 = scmp.ne.s32.totalorder %s56, %s59
      %p65 = scmp.eq.s32.totalorder %s20, 0
      %p66 = por %p64, %p65
      %p67 = scmp.ne.s32.totalorder %s56, %s59
      %p68 = scmp.eq.s32.totalorder %s25, 1
      %p69 = por %p67, %p68
      %p70 = scmp.ne.s32.totalorder %s59, %s60
      %p71 = scmp.eq.s32.totalorder %s25, 0
      %p72 = por %p70, %p71
      %p73 = scmp.ne.s32.totalorder %s59, %s60
      %p74 = scmp.eq.s32.totalorder %s26, 1
      %p75 = por %p73, %p74
      %p77 = scmp.ne.s32.totalorder %s60, %s76
      %p78 = scmp.eq.s32.totalorder %s26, 0
      %p79 = por %p77, %p78
      %s81 = sadd.s32 %s80, 1
      %p84 = scmp.eq.s32.totalorder %s20, 1
      %p85 = scmp.ne.s32.totalorder %s80, %s82
      %p86 = scmp.eq.s32.totalorder %s20, 0
      %p87 = por %p85, %p86
      %p88 = scmp.ne.s32.totalorder %s80, %s82
      %p89 = scmp.eq.s32.totalorder %s25, 1
      %p90 = por %p88, %p89
      %p91 = scmp.ne.s32.totalorder %s82, %s83
      %p92 = scmp.eq.s32.totalorder %s25, 0
      %p93 = por %p91, %p92
      %p94 = scmp.ne.s32.totalorder %s82, %s83
      %p95 = scmp.eq.s32.totalorder %s26, 1
      %p96 = por %p94, %p95
      %p98 = scmp.ne.s32.totalorder %s83, %s97
      %p99 = scmp.eq.s32.totalorder %s26, 0
      %p100 = por %p98, %p99
      %s102 = sadd.s32 %s101, 1
      %p105 = scmp.eq.s32.totalorder %s20, 1
      %p106 = scmp.ne.s32.totalorder %s101, %s103
      %p107 = scmp.eq.s32.totalorder %s20, 0
      %p108 = por %p106, %p107
      %p109 = scmp.ne.s32.totalorder %s101, %s103
      %p110 = scmp.eq.s32.totalorder %s25, 1
      %p111 = por %p109, %p110
      %p112 = scmp.ne.s32.totalorder %s103, %s104
      %p113 = scmp.eq.s32.totalorder %s25, 0
      %p114 = por %p112, %p113
      %p115 = scmp.ne.s32.totalorder %s103, %s104
      %p116 = scmp.eq.s32.totalorder %s26, 1
      %p117 = por %p115, %p116
      %p119 = scmp.ne.s32.totalorder %s104, %s118
      %p120 = scmp.eq.s32.totalorder %s26, 0
      %p121 = por %p119, %p120
      %s122 = ssub.s32 %s20, %s27
      %p123 = scmp.eq.s32.totalorder %s122, 0
      %s125 = sadd.s32 %s124, 1
      %s126 = scalar_select %p123, %s124, %s125
      %p129 = pneg %p123
      %p130 = scmp.eq.s32.totalorder %s20, 1
      %p131 = por %p129, %p130
      %p132 = scmp.ne.s32.totalorder %s124, %s127
      %p133 = scmp.eq.s32.totalorder %s20, 0
      %p134 = por %p132, %p133
      %p135 = scmp.ne.s32.totalorder %s124, %s127
      %p136 = scmp.eq.s32.totalorder %s25, 1
      %p137 = por %p135, %p136
      %p138 = scmp.ne.s32.totalorder %s127, %s128
      %p139 = scmp.eq.s32.totalorder %s25, 0
      %p140 = por %p138, %p139
      %p141 = scmp.ne.s32.totalorder %s127, %s128
      %p142 = scmp.eq.s32.totalorder %s26, 1
      %p143 = por %p141, %p142
      %p145 = scmp.ne.s32.totalorder %s128, %s144
      %p146 = scmp.eq.s32.totalorder %s26, 0
      %p147 = por %p145, %p146
      %p148 = scmp.le.s32.totalorder 1, %s20
      %p149 = scmp.lt.s32.totalorder %s20, 3
      %p150 = pnand %p148, %p149
      %p151 = pneg %p150
      // Predicated region
      $region9: #{tpu_custom_call.1} parent=5 // pred_check
        _
      $region10: #{tpu_custom_call.1} parent=5 // pred_check_branch
        %153 = sbr.rel (%p150) target = $region12
      $region11: #{tpu_custom_call.1} parent=5 // pred_region
        %s154 = ssub.s32 %s20, 1
        // Predicated region
        $region13: #{tpu_custom_call.1} parent=11 // pred_check
          %p155 = pneg %p93
        $region14: #{tpu_custom_call.1} parent=11 // pred_check_branch
          %157 = sbr.rel (%p155) target = $region16
        $region15: #{tpu_custom_call.1} parent=11 // pred_region
          %s159 = ssub.s32 2048, 2048
          %160 = vsyncadd [#allocation6], %s159
          %s161 = sshll.u32 [#allocation7], 4
          %s162 = int_to_ptr.vmem [resolvable:$true] %s161
          %167 = dma.hbm_to_vmem [thread:$0]  %s2, 2048, %s162, [#allocation6], 128, 128, 8
        $region16: #{tpu_custom_call.1} parent=11 // pred_fallthru
          _
        // Predicated region
        $region17: #{tpu_custom_call.1} parent=11 // pred_check
          %p168 = pneg %p114
        $region18: #{tpu_custom_call.1} parent=11 // pred_check_branch
          %170 = sbr.rel (%p168) target = $region20
        $region19: #{tpu_custom_call.1} parent=11 // pred_region
          %s172 = ssub.s32 2048, 2048
          %173 = vsyncadd [#allocation9], %s172
          %s174 = sshll.u32 [#allocation8], 4
          %s175 = int_to_ptr.vmem [resolvable:$true] %s174
          %180 = dma.hbm_to_vmem [thread:$0]  %s3, 2048, %s175, [#allocation9], 128, 128, 8
        $region20: #{tpu_custom_call.1} parent=11 // pred_fallthru
          _
      $region12: #{tpu_custom_call.1} parent=5 // pred_fallthru
        _
      %p181 = scmp.lt.s32.totalorder %s20, 2
      // Predicated region
      $region21: #{tpu_custom_call.1} parent=5 // pred_check
        %p182 = pneg %p181
      $region22: #{tpu_custom_call.1} parent=5 // pred_check_branch
        %184 = sbr.rel (%p182) target = $region24
      $region23: #{tpu_custom_call.1} parent=5 // pred_region
        // Predicated region
        $region25: #{tpu_custom_call.1} parent=23 // pred_check
          %p185 = pneg %p40
        $region26: #{tpu_custom_call.1} parent=23 // pred_check_branch
          %187 = sbr.rel (%p185) target = $region28
        $region27: #{tpu_custom_call.1} parent=23 // pred_region
          %s188 = sand.u32 %s30, 1
          %s189 = scalar_lea.sflag [#allocation3], %s188
          %s190 = sand.u32 %s30, 1
          %s191 = smul.addr %s190, 16
          %s192 = scalar_lea.vmem [#allocation2], %s191
          %s193 = smul.u32 2, %s20
          %s195 = ssub.s32 256, 256
          %196 = vsyncadd %s189, %s195
          %s197 = smul.addr %s193, 128
          %s198 = scalar_lea.hbm %s0, %s197
          %s199 = sshll.u32 %s192, 4
          %s200 = int_to_ptr.vmem [resolvable:$true] %s199
          %205 = dma.hbm_to_vmem [thread:$0]  %s198, 256, %s200, %s189, 128, 128, 8
        $region28: #{tpu_custom_call.1} parent=23 // pred_fallthru
          _
        // Predicated region
        $region29: #{tpu_custom_call.1} parent=23 // pred_check
          %p206 = pneg %p66
        $region30: #{tpu_custom_call.1} parent=23 // pred_check_branch
          %208 = sbr.rel (%p206) target = $region32
        $region31: #{tpu_custom_call.1} parent=23 // pred_region
          %s209 = sand.u32 %s20, 1
          %s210 = scalar_lea.sflag [#allocation6], %s209
          %s211 = sand.u32 %s56, 1
          %s212 = smul.addr %s211, 16
          %s213 = scalar_lea.vmem [#allocation5], %s212
          %s214 = smul.u32 2, %s20
          %s216 = ssub.s32 256, 256
          %217 = vsyncadd %s210, %s216
          %s218 = smul.addr %s214, 128
          %s219 = scalar_lea.hbm %s1, %s218
          %s220 = sshll.u32 %s213, 4
          %s221 = int_to_ptr.vmem [resolvable:$true] %s220
          %226 = dma.hbm_to_vmem [thread:$0]  %s219, 256, %s221, %s210, 128, 128, 8
        $region32: #{tpu_custom_call.1} parent=23 // pred_fallthru
          _
      $region24: #{tpu_custom_call.1} parent=5 // pred_fallthru
        _
      %p227 = scmp.le.s32.totalorder 1, %s20
      %p228 = scmp.lt.s32.totalorder %s20, 3
      %p229 = pnand %p227, %p228
      %p230 = pneg %p229
      // Predicated region
      $region33: #{tpu_custom_call.1} parent=5 // pred_check
        _
      $region34: #{tpu_custom_call.1} parent=5 // pred_check_branch
        %232 = sbr.rel (%p229) target = $region36
      $region35: #{tpu_custom_call.1} parent=5 // pred_region
        %s233 = ssub.s32 %s20, 1
        %s234 = sand.u32 %s33, 1
        %s235 = scalar_lea.sflag [#allocation3], %s234
        %s236 = sand.u32 %s33, 1
        %s237 = smul.addr %s236, 16
        %s238 = scalar_lea.vmem [#allocation2], %s237
        // Predicated region
        $region37: #{tpu_custom_call.1} parent=35 // pred_check
          %p239 = pneg %p46
        $region38: #{tpu_custom_call.1} parent=35 // pred_check_branch
          %241 = sbr.rel (%p239) target = $region40
        $region39: #{tpu_custom_call.1} parent=35 // pred_region
          %242 = dma.done %s235, 256
        $region40: #{tpu_custom_call.1} parent=35 // pred_fallthru
          _
        %s243 = sand.u32 %s25, 1
        %s244 = scalar_lea.sflag [#allocation6], %s243
        %s245 = sand.u32 %s59, 1
        %s246 = smul.addr %s245, 16
        %s247 = scalar_lea.vmem [#allocation5], %s246
        // Predicated region
        $region41: #{tpu_custom_call.1} parent=35 // pred_check
          %p248 = pneg %p72
        $region42: #{tpu_custom_call.1} parent=35 // pred_check_branch
          %250 = sbr.rel (%p248) target = $region44
        $region43: #{tpu_custom_call.1} parent=35 // pred_region
          %251 = dma.done %s244, 256
        $region44: #{tpu_custom_call.1} parent=35 // pred_fallthru
          _
        // Predicated region
        $region45: #{tpu_custom_call.1} parent=35 // pred_check
          %p252 = pneg %p93
        $region46: #{tpu_custom_call.1} parent=35 // pred_check_branch
          %254 = sbr.rel (%p252) target = $region48
        $region47: #{tpu_custom_call.1} parent=35 // pred_region
          %255 = dma.done [#allocation6], 2048
        $region48: #{tpu_custom_call.1} parent=35 // pred_fallthru
          _
        // Predicated region
        $region49: #{tpu_custom_call.1} parent=35 // pred_check
          %p256 = pneg %p114
        $region50: #{tpu_custom_call.1} parent=35 // pred_check_branch
          %258 = sbr.rel (%p256) target = $region52
        $region51: #{tpu_custom_call.1} parent=35 // pred_region
          %259 = dma.done [#allocation9], 2048
        $region52: #{tpu_custom_call.1} parent=35 // pred_fallthru
          _
        %s260 = sand.u32 %s33, 1
        %s261 = scalar_lea.sflag [#allocation3], %s260
        %s262 = sand.u32 %s33, 1
        %s263 = smul.addr %s262, 16
        %s264 = scalar_lea.vmem [#allocation2], %s263
        %p265 = pneg %p46
        %p266 = pneg %p43
        %s267 = sand.u32 %s25, 1
        %s268 = scalar_lea.sflag [#allocation6], %s267
        %s269 = sand.u32 %s59, 1
        %s270 = smul.addr %s269, 16
        %s271 = scalar_lea.vmem [#allocation5], %s270
        %p272 = pneg %p72
        %p273 = pneg %p69
        %p274 = pneg %p93
        %p275 = pneg %p90
        %p276 = pneg %p114
        %p277 = pneg %p111
        %p278 = pneg %p140
        %p279 = pneg %p137
        %s280 = sand.u32 %s127, 1
        %s281 = scalar_lea.sflag [#allocation4], %s280
        %s282 = sand.u32 %s127, 1
        %s283 = smul.addr %s282, 16
        %s284 = scalar_lea.vmem [#allocation10], %s283
        %s285 = smul.u32 2, %s25
        %s286 = smul.u32 2, %s25
        %s287 = smul.u32 2, %s25
        %v288 = vld [vmem:[%s238] sm:$0xff]
        %v289 = vld [vmem:[%s238 + $0x8] sm:$0xff]
        %v290 = vld [vmem:[#allocation7] sm:$0xff]
        %v291 = vld [vmem:[#allocation7 + $0x8] sm:$0xff]
        %v292 = vld [vmem:[#allocation7 + $0x10] sm:$0xff]
        %v293 = vld [vmem:[#allocation7 + $0x18] sm:$0xff]
        %v294 = vld [vmem:[#allocation7 + $0x20] sm:$0xff]
        %v295 = vld [vmem:[#allocation7 + $0x28] sm:$0xff]
        %v296 = vld [vmem:[#allocation7 + $0x30] sm:$0xff]
        %v297 = vld [vmem:[#allocation7 + $0x38] sm:$0xff]
        %v298 = vld [vmem:[#allocation7 + $0x40] sm:$0xff]
        %v299 = vld [vmem:[#allocation7 + $0x48] sm:$0xff]
        %v300 = vld [vmem:[#allocation7 + $0x50] sm:$0xff]
        %v301 = vld [vmem:[#allocation7 + $0x58] sm:$0xff]
        %v302 = vld [vmem:[#allocation7 + $0x60] sm:$0xff]
        %v303 = vld [vmem:[#allocation7 + $0x68] sm:$0xff]
        %v304 = vld [vmem:[#allocation7 + $0x70] sm:$0xff]
        %v305 = vld [vmem:[#allocation7 + $0x78] sm:$0xff]
        %v306 = vmul.f32 %v288, %v288
        %v307 = vmul.f32 %v289, %v289
        %308 = vadd.xlane.f32.xlu0 %v306
        %v309 = vpop.xlane.xlu0 %308
        %310 = vadd.xlane.f32.xlu0 %v307
        %v311 = vpop.xlane.xlu0 %310
        %v312 = vrsqrt.pop %v309
        %v313 = vmul.f32 %v309, %v312
        %vm314 = vcmp.eq.f32.partialorder %v309, inf
        %v315 = vsel %vm314, %v309, %v313
        %vm316 = vcmp.eq.f32.partialorder %v309, 0.0
        %v317 = vand.u32 %v309, 2147483648
        %v318 = vsel %vm316, %v317, %v315
        %v319 = vrsqrt.pop %v311
        %v320 = vmul.f32 %v311, %v319
        %vm321 = vcmp.eq.f32.partialorder %v311, inf
        %v322 = vsel %vm321, %v311, %v320
        %vm323 = vcmp.eq.f32.partialorder %v311, 0.0
        %v324 = vand.u32 %v311, 2147483648
        %v325 = vsel %vm323, %v324, %v322
        %v326 = vmax.f32 %v318, 1e-05
        %v327 = vmax.f32 %v325, 1e-05
        %328 = vmatprep.subr.mxu0 0.0
        %329 = vmatpush1.msra.mxu0 %v290
        %330 = vmatprep.subr.mxu0 0.0
        %331 = vmatpush1.msra.mxu0 %v291
        %332 = vmatprep.subr.mxu0 0.0
        %333 = vmatpush1.msra.mxu0 %v292
        %334 = vmatprep.subr.mxu0 0.0
        %335 = vmatpush1.msra.mxu0 %v293
        %336 = vmatprep.subr.mxu0 0.0
        %337 = vmatpush1.msra.mxu0 %v294
        %338 = vmatprep.subr.mxu0 0.0
        %339 = vmatpush1.msra.mxu0 %v295
        %340 = vmatprep.subr.mxu0 0.0
        %341 = vmatpush1.msra.mxu0 %v296
        %342 = vmatprep.subr.mxu0 0.0
        %343 = vmatpush1.msra.mxu0 %v297
        %344 = vmatprep.subr.mxu0 0.0
        %345 = vmatpush1.msra.mxu0 %v298
        %346 = vmatprep.subr.mxu0 0.0
        %347 = vmatpush1.msra.mxu0 %v299
        %348 = vmatprep.subr.mxu0 0.0
        %349 = vmatpush1.msra.mxu0 %v300
        %350 = vmatprep.subr.mxu0 0.0
        %351 = vmatpush1.msra.mxu0 %v301
        %352 = vmatprep.subr.mxu0 0.0
        %353 = vmatpush1.msra.mxu0 %v302
        %354 = vmatprep.subr.mxu0 0.0
        %355 = vmatpush1.msra.mxu0 %v303
        %356 = vmatprep.subr.mxu0 0.0
        %357 = vmatpush1.msra.mxu0 %v304
        %358 = vmatprep.subr.mxu0 0.0
        %359 = vmatpush1.msra.mxu0 %v305
        %360 = vmatprep.subr.mxu0 0.0
        %361 = vmatpush1.msra.mxu0 0.0
        %362 = vmatprep.subr.mxu0 0.0
        %363 = vmatpush1.msra.mxu0 0.0
        %364 = vmatprep.subr.mxu0 0.0
        %365 = vmatpush1.msra.mxu0 0.0
        %366 = vmatprep.subr.mxu0 0.0
        %367 = vmatpush1.msra.mxu0 0.0
        %368 = vmatprep.subr.mxu0 0.0
        %369 = vmatpush1.msra.mxu0 0.0
        %370 = vmatprep.subr.mxu0 0.0
        %371 = vmatpush1.msra.mxu0 0.0
        %372 = vmatprep.subr.mxu0 0.0
        %373 = vmatpush1.msra.mxu0 0.0
        %374 = vmatprep.subr.mxu0 0.0
        %375 = vmatpush1.msra.mxu0 0.0
        %376 = vmatprep.subr.mxu0 0.0
        %377 = vmatpush1.msra.mxu0 0.0
        %378 = vmatprep.subr.mxu0 0.0
        %379 = vmatpush1.msra.mxu0 0.0
        %380 = vmatprep.subr.mxu0 0.0
        %381 = vmatpush1.msra.mxu0 0.0
        %382 = vmatprep.subr.mxu0 0.0
        %383 = vmatpush1.msra.mxu0 0.0
        %384 = vmatprep.subr.mxu0 0.0
        %385 = vmatpush1.msra.mxu0 0.0
        %386 = vmatprep.subr.mxu0 0.0
        %387 = vmatpush1.msra.mxu0 0.0
        %388 = vmatprep.subr.mxu0 0.0
        %389 = vmatpush1.msra.mxu0 0.0
        %390 = vmatprep.subr.mxu0 0.0
        %391 = vmatpush1.msra.mxu0 0.0
        %392 = vmatprep.mubr.f32.mxu0 0.0
        %393 = vmatmul.mubr.f32.gmra.mrb[0].mxu0 %v288
        %v394 = vpop.f32.mrb[0].mxu0
        %v395 = vadd.f32 0.0, %v394
        %v396 = vpop.f32.mrb[0].mxu0
        %397 = vmatprep.mubr.f32.mxu0 0.0
        %398 = vmatmul.mubr.f32.gmra.mrb[0].mxu0 %v289
        %v399 = vpop.f32.mrb[0].mxu0
        %v400 = vadd.f32 0.0, %v399
        %v401 = vpop.f32.mrb[0].mxu0
        %402 = vdwg.mxu0
        %v403 = vmul.f32 %v395, %v395
        %v404 = vmul.f32 %v400, %v400
        %405 = vadd.xlane.f32.xlu0 %v403
        %v406 = vpop.xlane.xlu0 %405
        %407 = vadd.xlane.f32.xlu0 %v404
        %v408 = vpop.xlane.xlu0 %407
        %v409 = vrsqrt.pop %v406
        %v410 = vmul.f32 %v406, %v409
        %vm411 = vcmp.eq.f32.partialorder %v406, inf
        %v412 = vsel %vm411, %v406, %v410
        %vm413 = vcmp.eq.f32.partialorder %v406, 0.0
        %v414 = vand.u32 %v406, 2147483648
        %v415 = vsel %vm413, %v414, %v412
        %v416 = vrsqrt.pop %v408
        %v417 = vmul.f32 %v408, %v416
        %vm418 = vcmp.eq.f32.partialorder %v408, inf
        %v419 = vsel %vm418, %v408, %v417
        %vm420 = vcmp.eq.f32.partialorder %v408, 0.0
        %v421 = vand.u32 %v408, 2147483648
        %v422 = vsel %vm420, %v421, %v419
        %v423 = vmax.f32 %v415, 1e-05
        %v424 = vmax.f32 %v422, 1e-05
        %v425 = vrcp.pop %v326
        %v426 = vmul.f32 %v423, %v425
        %v427 = vrcp.pop %v327
        %v428 = vmul.f32 %v424, %v427
        %v429 = vmax.f32 %v326, -0.99999
        %v430 = vmax.f32 %v327, -0.99999
        %v431 = vmin.f32 %v429, 0.99999
        %v432 = vmin.f32 %v430, 0.99999
        %v433 = vadd.f32 %v431, 1.0
        %v434 = vlog2.pop %v433
        %v435 = vmul.f32 %v434, 0.6931472
        %v436 = vmul.f32 -0.5, %v431
        %v437 = vadd.f32 %v436, 1.0
        %v438 = vmul.f32 %v437, %v431
        %v439 = vand.u32 2147483647, %v431
        %vm440 = vcmp.lt.f32.partialorder %v439, 0.0004427343
        %v441 = vsel %vm440, %v438, %v435
        %v442 = vadd.f32 %v432, 1.0
        %v443 = vlog2.pop %v442
        %v444 = vmul.f32 %v443, 0.6931472
        %v445 = vmul.f32 -0.5, %v432
        %v446 = vadd.f32 %v445, 1.0
        %v447 = vmul.f32 %v446, %v432
        %v448 = vand.u32 2147483647, %v432
        %vm449 = vcmp.lt.f32.partialorder %v448, 0.0004427343
        %v450 = vsel %vm449, %v447, %v444
        %v451 = vsub.f32 0.0, %v431
        %v452 = vsub.f32 0.0, %v432
        %v453 = vadd.f32 %v451, 1.0
        %v454 = vlog2.pop %v453
        %v455 = vmul.f32 %v454, 0.6931472
        %v456 = vmul.f32 -0.5, %v451
        %v457 = vadd.f32 %v456, 1.0
        %v458 = vmul.f32 %v457, %v451
        %v459 = vand.u32 2147483647, %v451
        %vm460 = vcmp.lt.f32.partialorder %v459, 0.0004427343
        %v461 = vsel %vm460, %v458, %v455
        %v462 = vadd.f32 %v452, 1.0
        %v463 = vlog2.pop %v462
        %v464 = vmul.f32 %v463, 0.6931472
        %v465 = vmul.f32 -0.5, %v452
        %v466 = vadd.f32 %v465, 1.0
        %v467 = vmul.f32 %v466, %v452
        %v468 = vand.u32 2147483647, %v452
        %vm469 = vcmp.lt.f32.partialorder %v468, 0.0004427343
        %v470 = vsel %vm469, %v467, %v464
        %v471 = vsub.f32 %v441, %v461
        %v472 = vsub.f32 %v450, %v470
        %v473 = vmul.f32 %v471, 0.5
        %v474 = vmul.f32 %v472, 0.5
        %v475 = vmul.f32 %v426, %v473
        %v476 = vmul.f32 %v428, %v474
        %v477 = vmax.f32 %v475, -15.0
        %v478 = vmax.f32 %v476, -15.0
        %v479 = vmin.f32 %v477, 15.0
        %v480 = vmin.f32 %v478, 15.0
        %v481 = vtanh.pop %v479
        %v482 = vtanh.pop %v480
        %v483 = vmax.f32 %v481, 1e-05
        %v484 = vmax.f32 %v482, 1e-05
        %v485 = vrcp.pop %v483
        %v486 = vmul.f32 0.999, %v485
        %v487 = vrcp.pop %v484
        %v488 = vmul.f32 0.999, %v487
        %v489 = vmin.f32 %v486, 1.0
        %v490 = vmin.f32 %v488, 1.0
        %v491 = vrcp.pop %v423
        %v492 = vmul.f32 %v481, %v491
        %v493 = vrcp.pop %v424
        %v494 = vmul.f32 %v482, %v493
        %v495 = vmul.f32 %v492, %v489
        %v496 = vmul.f32 %v494, %v490
        %v497 = vmul.f32 %v395, %v495
        %v498 = vmul.f32 %v400, %v496
        %v499 = vmin.f32 %v481, 0.999
        %v500 = vmin.f32 %v482, 0.999
        %v501 = vmul.f32 %v499, %v499
        %v502 = vmul.f32 %v500, %v500
        %v503 = vld [vmem:[%s247] sm:$0xff]
        %v504 = vld [vmem:[%s247 + $0x8] sm:$0xff]
        %v505 = vld [vmem:[#allocation8] sm:$0xff]
        %v506 = vld [vmem:[#allocation8 + $0x8] sm:$0xff]
        %v507 = vld [vmem:[#allocation8 + $0x10] sm:$0xff]
        %v508 = vld [vmem:[#allocation8 + $0x18] sm:$0xff]
        %v509 = vld [vmem:[#allocation8 + $0x20] sm:$0xff]
        %v510 = vld [vmem:[#allocation8 + $0x28] sm:$0xff]
        %v511 = vld [vmem:[#allocation8 + $0x30] sm:$0xff]
        %v512 = vld [vmem:[#allocation8 + $0x38] sm:$0xff]
        %v513 = vld [vmem:[#allocation8 + $0x40] sm:$0xff]
        %v514 = vld [vmem:[#allocation8 + $0x48] sm:$0xff]
        %v515 = vld [vmem:[#allocation8 + $0x50] sm:$0xff]
        %v516 = vld [vmem:[#allocation8 + $0x58] sm:$0xff]
        %v517 = vld [vmem:[#allocation8 + $0x60] sm:$0xff]
        %v518 = vld [vmem:[#allocation8 + $0x68] sm:$0xff]
        %v519 = vld [vmem:[#allocation8 + $0x70] sm:$0xff]
        %v520 = vld [vmem:[#allocation8 + $0x78] sm:$0xff]
        %v521 = vmul.f32 %v503, %v503
        %v522 = vmul.f32 %v504, %v504
        %523 = vadd.xlane.f32.xlu0 %v521
        %v524 = vpop.xlane.xlu0 %523
        %525 = vadd.xlane.f32.xlu0 %v522
        %v526 = vpop.xlane.xlu0 %525
        %v527 = vrsqrt.pop %v524
        %v528 = vmul.f32 %v524, %v527
        %vm529 = vcmp.eq.f32.partialorder %v524, inf
        %v530 = vsel %vm529, %v524, %v528
        %vm531 = vcmp.eq.f32.partialorder %v524, 0.0
        %v532 = vand.u32 %v524, 2147483648
        %v533 = vsel %vm531, %v532, %v530
        %v534 = vrsqrt.pop %v526
        %v535 = vmul.f32 %v526, %v534
        %vm536 = vcmp.eq.f32.partialorder %v526, inf
        %v537 = vsel %vm536, %v526, %v535
        %vm538 = vcmp.eq.f32.partialorder %v526, 0.0
        %v539 = vand.u32 %v526, 2147483648
        %v540 = vsel %vm538, %v539, %v537
        %v541 = vmax.f32 %v533, 1e-05
        %v542 = vmax.f32 %v540, 1e-05
        %543 = vmatprep.subr.mxu0 0.0
        %544 = vmatpush1.msra.mxu0 %v505
        %545 = vmatprep.subr.mxu0 0.0
        %546 = vmatpush1.msra.mxu0 %v506
        %547 = vmatprep.subr.mxu0 0.0
        %548 = vmatpush1.msra.mxu0 %v507
        %549 = vmatprep.subr.mxu0 0.0
        %550 = vmatpush1.msra.mxu0 %v508
        %551 = vmatprep.subr.mxu0 0.0
        %552 = vmatpush1.msra.mxu0 %v509
        %553 = vmatprep.subr.mxu0 0.0
        %554 = vmatpush1.msra.mxu0 %v510
        %555 = vmatprep.subr.mxu0 0.0
        %556 = vmatpush1.msra.mxu0 %v511
        %557 = vmatprep.subr.mxu0 0.0
        %558 = vmatpush1.msra.mxu0 %v512
        %559 = vmatprep.subr.mxu0 0.0
        %560 = vmatpush1.msra.mxu0 %v513
        %561 = vmatprep.subr.mxu0 0.0
        %562 = vmatpush1.msra.mxu0 %v514
        %563 = vmatprep.subr.mxu0 0.0
        %564 = vmatpush1.msra.mxu0 %v515
        %565 = vmatprep.subr.mxu0 0.0
        %566 = vmatpush1.msra.mxu0 %v516
        %567 = vmatprep.subr.mxu0 0.0
        %568 = vmatpush1.msra.mxu0 %v517
        %569 = vmatprep.subr.mxu0 0.0
        %570 = vmatpush1.msra.mxu0 %v518
        %571 = vmatprep.subr.mxu0 0.0
        %572 = vmatpush1.msra.mxu0 %v519
        %573 = vmatprep.subr.mxu0 0.0
        %574 = vmatpush1.msra.mxu0 %v520
        %575 = vmatprep.subr.mxu0 0.0
        %576 = vmatpush1.msra.mxu0 0.0
        %577 = vmatprep.subr.mxu0 0.0
        %578 = vmatpush1.msra.mxu0 0.0
        %579 = vmatprep.subr.mxu0 0.0
        %580 = vmatpush1.msra.mxu0 0.0
        %581 = vmatprep.subr.mxu0 0.0
        %582 = vmatpush1.msra.mxu0 0.0
        %583 = vmatprep.subr.mxu0 0.0
        %584 = vmatpush1.msra.mxu0 0.0
        %585 = vmatprep.subr.mxu0 0.0
        %586 = vmatpush1.msra.mxu0 0.0
        %587 = vmatprep.subr.mxu0 0.0
        %588 = vmatpush1.msra.mxu0 0.0
        %589 = vmatprep.subr.mxu0 0.0
        %590 = vmatpush1.msra.mxu0 0.0
        %591 = vmatprep.subr.mxu0 0.0
        %592 = vmatpush1.msra.mxu0 0.0
        %593 = vmatprep.subr.mxu0 0.0
        %594 = vmatpush1.msra.mxu0 0.0
        %595 = vmatprep.subr.mxu0 0.0
        %596 = vmatpush1.msra.mxu0 0.0
        %597 = vmatprep.subr.mxu0 0.0
        %598 = vmatpush1.msra.mxu0 0.0
        %599 = vmatprep.subr.mxu0 0.0
        %600 = vmatpush1.msra.mxu0 0.0
        %601 = vmatprep.subr.mxu0 0.0
        %602 = vmatpush1.msra.mxu0 0.0
        %603 = vmatprep.subr.mxu0 0.0
        %604 = vmatpush1.msra.mxu0 0.0
        %605 = vmatprep.subr.mxu0 0.0
        %606 = vmatpush1.msra.mxu0 0.0
        %607 = vmatprep.mubr.f32.mxu0 0.0
        %608 = vmatmul.mubr.f32.gmra.mrb[0].mxu0 %v503
        %v609 = vpop.f32.mrb[0].mxu0
        %v610 = vadd.f32 0.0, %v609
        %v611 = vpop.f32.mrb[0].mxu0
        %612 = vmatprep.mubr.f32.mxu0 0.0
        %613 = vmatmul.mubr.f32.gmra.mrb[0].mxu0 %v504
        %v614 = vpop.f32.mrb[0].mxu0
        %v615 = vadd.f32 0.0, %v614
        %v616 = vpop.f32.mrb[0].mxu0
        %617 = vdwg.mxu0
        %v618 = vmul.f32 %v610, %v610
        %v619 = vmul.f32 %v615, %v615
        %620 = vadd.xlane.f32.xlu0 %v618
        %v621 = vpop.xlane.xlu0 %620
        %622 = vadd.xlane.f32.xlu0 %v619
        %v623 = vpop.xlane.xlu0 %622
        %v624 = vrsqrt.pop %v621
        %v625 = vmul.f32 %v621, %v624
        %vm626 = vcmp.eq.f32.partialorder %v621, inf
        %v627 = vsel %vm626, %v621, %v625
        %vm628 = vcmp.eq.f32.partialorder %v621, 0.0
        %v629 = vand.u32 %v621, 2147483648
        %v630 = vsel %vm628, %v629, %v627
        %v631 = vrsqrt.pop %v623
        %v632 = vmul.f32 %v623, %v631
        %vm633 = vcmp.eq.f32.partialorder %v623, inf
        %v634 = vsel %vm633, %v623, %v632
        %vm635 = vcmp.eq.f32.partialorder %v623, 0.0
        %v636 = vand.u32 %v623, 2147483648
        %v637 = vsel %vm635, %v636, %v634
        %v638 = vmax.f32 %v630, 1e-05
        %v639 = vmax.f32 %v637, 1e-05
        %v640 = vrcp.pop %v541
        %v641 = vmul.f32 %v638, %v640
        %v642 = vrcp.pop %v542
        %v643 = vmul.f32 %v639, %v642
        %v644 = vmax.f32 %v541, -0.99999
        %v645 = vmax.f32 %v542, -0.99999
        %v646 = vmin.f32 %v644, 0.99999
        %v647 = vmin.f32 %v645, 0.99999
        %v648 = vadd.f32 %v646, 1.0
        %v649 = vlog2.pop %v648
        %v650 = vmul.f32 %v649, 0.6931472
        %v651 = vmul.f32 -0.5, %v646
        %v652 = vadd.f32 %v651, 1.0
        %v653 = vmul.f32 %v652, %v646
        %v654 = vand.u32 2147483647, %v646
        %vm655 = vcmp.lt.f32.partialorder %v654, 0.0004427343
        %v656 = vsel %vm655, %v653, %v650
        %v657 = vadd.f32 %v647, 1.0
        %v658 = vlog2.pop %v657
        %v659 = vmul.f32 %v658, 0.6931472
        %v660 = vmul.f32 -0.5, %v647
        %v661 = vadd.f32 %v660, 1.0
        %v662 = vmul.f32 %v661, %v647
        %v663 = vand.u32 2147483647, %v647
        %vm664 = vcmp.lt.f32.partialorder %v663, 0.0004427343
        %v665 = vsel %vm664, %v662, %v659
        %v666 = vsub.f32 0.0, %v646
        %v667 = vsub.f32 0.0, %v647
        %v668 = vadd.f32 %v666, 1.0
        %v669 = vlog2.pop %v668
        %v670 = vmul.f32 %v669, 0.6931472
        %v671 = vmul.f32 -0.5, %v666
        %v672 = vadd.f32 %v671, 1.0
        %v673 = vmul.f32 %v672, %v666
        %v674 = vand.u32 2147483647, %v666
        %vm675 = vcmp.lt.f32.partialorder %v674, 0.0004427343
        %v676 = vsel %vm675, %v673, %v670
        %v677 = vadd.f32 %v667, 1.0
        %v678 = vlog2.pop %v677
        %v679 = vmul.f32 %v678, 0.6931472
        %v680 = vmul.f32 -0.5, %v667
        %v681 = vadd.f32 %v680, 1.0
        %v682 = vmul.f32 %v681, %v667
        %v683 = vand.u32 2147483647, %v667
        %vm684 = vcmp.lt.f32.partialorder %v683, 0.0004427343
        %v685 = vsel %vm684, %v682, %v679
        %v686 = vsub.f32 %v656, %v676
        %v687 = vsub.f32 %v665, %v685
        %v688 = vmul.f32 %v686, 0.5
        %v689 = vmul.f32 %v687, 0.5
        %v690 = vmul.f32 %v641, %v688
        %v691 = vmul.f32 %v643, %v689
        %v692 = vmax.f32 %v690, -15.0
        %v693 = vmax.f32 %v691, -15.0
        %v694 = vmin.f32 %v692, 15.0
        %v695 = vmin.f32 %v693, 15.0
        %v696 = vtanh.pop %v694
        %v697 = vtanh.pop %v695
        %v698 = vmax.f32 %v696, 1e-05
        %v699 = vmax.f32 %v697, 1e-05
        %v700 = vrcp.pop %v698
        %v701 = vmul.f32 0.999, %v700
        %v702 = vrcp.pop %v699
        %v703 = vmul.f32 0.999, %v702
        %v704 = vmin.f32 %v701, 1.0
        %v705 = vmin.f32 %v703, 1.0
        %v706 = vrcp.pop %v638
        %v707 = vmul.f32 %v696, %v706
        %v708 = vrcp.pop %v639
        %v709 = vmul.f32 %v697, %v708
        %v710 = vmul.f32 %v707, %v704
        %v711 = vmul.f32 %v709, %v705
        %v712 = vmul.f32 %v610, %v710
        %v713 = vmul.f32 %v615, %v711
        %v714 = vmin.f32 %v696, 0.999
        %v715 = vmin.f32 %v697, 0.999
        %v716 = vmul.f32 %v714, %v714
        %v717 = vmul.f32 %v715, %v715
        %v718 = vmul.f32 %v497, %v712
        %v719 = vmul.f32 %v498, %v713
        %720 = vadd.xlane.f32.xlu0 %v718
        %v721 = vpop.xlane.xlu0 %720
        %722 = vadd.xlane.f32.xlu0 %v719
        %v723 = vpop.xlane.xlu0 %722
        %v724 = vmul.f32 %v721, 2.0
        %v725 = vmul.f32 %v723, 2.0
        %v726 = vadd.f32 %v724, 1.0
        %v727 = vadd.f32 %v725, 1.0
        %v728 = vadd.f32 %v726, %v716
        %v729 = vadd.f32 %v727, %v717
        %v730 = vsub.f32 1.0, %v501
        %v731 = vsub.f32 1.0, %v502
        %v732 = vmul.f32 %v728, %v497
        %v733 = vmul.f32 %v729, %v498
        %v734 = vmul.f32 %v730, %v712
        %v735 = vmul.f32 %v731, %v713
        %v736 = vadd.f32 %v732, %v734
        %v737 = vadd.f32 %v733, %v735
        %v738 = vmul.f32 %v501, %v716
        %v739 = vmul.f32 %v502, %v717
        %v740 = vadd.f32 %v726, %v738
        %v741 = vadd.f32 %v727, %v739
        %v742 = vadd.f32 %v740, 1e-05
        %v743 = vadd.f32 %v741, 1e-05
        %v744 = vrcp.pop %v742
        %v745 = vmul.f32 1.0, %v744
        %v746 = vrcp.pop %v743
        %v747 = vmul.f32 1.0, %v746
        %v748 = vmul.f32 %v736, %v745
        %v749 = vmul.f32 %v737, %v747
        %750 = vst [vmem:[%s284] sm:$0xff] %v748
        %751 = vst [vmem:[%s284 + $0x8] sm:$0xff] %v749
        %s752 = sand.u32 %s127, 1
        %s753 = scalar_lea.sflag [#allocation4], %s752
        %s754 = sand.u32 %s127, 1
        %s755 = smul.addr %s754, 16
        %s756 = scalar_lea.vmem [#allocation10], %s755
        // Predicated region
        $region53: #{tpu_custom_call.1} parent=35 // pred_check
          %p757 = pneg %p137
        $region54: #{tpu_custom_call.1} parent=35 // pred_check_branch
          %759 = sbr.rel (%p757) target = $region56
        $region55: #{tpu_custom_call.1} parent=35 // pred_region
          %s760 = smul.u32 2, %s25
          %s762 = ssub.s32 256, 256
          %763 = vsyncadd %s753, %s762
          %s764 = smul.addr %s760, 128
          %s765 = scalar_lea.hbm %s4, %s764
          %s766 = sshll.u32 %s756, 4
          %s767 = int_to_ptr.vmem [resolvable:$true] %s766
          %772 = dma.vmem_to_hbm [thread:$0]  %s767, 256, %s765, %s753, 128, 128, 8
        $region56: #{tpu_custom_call.1} parent=35 // pred_fallthru
          _
      $region36: #{tpu_custom_call.1} parent=5 // pred_fallthru
        _
      %p773 = scmp.le.s32.totalorder 2, %s20
      // Predicated region
      $region57: #{tpu_custom_call.1} parent=5 // pred_check
        %p774 = pneg %p773
      $region58: #{tpu_custom_call.1} parent=5 // pred_check_branch
        %776 = sbr.rel (%p774) target = $region60
      $region59: #{tpu_custom_call.1} parent=5 // pred_region
        %s777 = ssub.s32 %s20, 2
        // Predicated region
        $region61: #{tpu_custom_call.1} parent=59 // pred_check
          %p778 = pneg %p143
        $region62: #{tpu_custom_call.1} parent=59 // pred_check_branch
          %780 = sbr.rel (%p778) target = $region64
        $region63: #{tpu_custom_call.1} parent=59 // pred_region
          %s781 = sand.u32 %s128, 1
          %s782 = scalar_lea.sflag [#allocation4], %s781
          %s783 = sand.u32 %s128, 1
          %s784 = smul.addr %s783, 16
          %s785 = scalar_lea.vmem [#allocation10], %s784
          %786 = dma.done %s782, 256
        $region64: #{tpu_custom_call.1} parent=59 // pred_fallthru
          _
      $region60: #{tpu_custom_call.1} parent=5 // pred_fallthru
        _
    $region6: #{tpu_custom_call.1} parent=1 // loop_footer
      %s24 = sadd.s32 1, %s20
    $region7: #{tpu_custom_call.1} parent=1 // loop_footer_branch
      %19 = sbr.rel target = $region3
    $region8: #{tpu_custom_call.1} parent=1 // loop_exit
      _
    %787 = vsyncpa [#allocation3], 1
    %s788 = scalar_lea.sflag [#allocation3], 1
    %789 = vsyncpa %s788, 1
    %790 = vsyncpa [#allocation6], 1
    %s791 = scalar_lea.sflag [#allocation6], 1
    %792 = vsyncpa %s791, 1
    %793 = vsyncpa [#allocation9], 1
    %794 = vsyncpa [#allocation4], 1
    %s795 = scalar_lea.sflag [#allocation4], 1
    %796 = vsyncpa %s795, 1

</llo_original>
